<compile_context>
chip_gen: v5e
topology: v5e:2x2
jax: 0.10.0
libtpu: 0.0.40
codegen_flags: <defaults>
</compile_context>

<pallas_src>
import functools

import jax
import jax.numpy as jnp
from jax.experimental import pallas as pl
from jax.experimental.pallas import tpu as pltpu


def _merge_ln_proj_kernel(x_ref, we_ref, wo_ref, b_ref, o_ref, *, eps, inv_k):
    """One tile of merged tokens: 2x2 merge + LayerNorm(4C) + Linear(4C->2C).

    x_ref : (TR, 2, WH, 2C)  TR half-row pairs. [:,0] = even image rows -> [x0|x2]
                             channels, [:,1] = odd image rows -> [x1|x3] channels.
    we_ref: (2C, N)  bf16    gamma-scaled projection rows for the [x0|x2] channels
    wo_ref: (2C, N)  bf16    gamma-scaled projection rows for the [x1|x3] channels
    b_ref : (1, N)   f32     beta @ W  (folded LayerNorm bias)
    o_ref : (TR*WH, N)       merged tokens in (row-pair, w2) row-major order
    """
    x = x_ref[...].astype(jnp.float32)              # (TR, 2, WH, 2C)
    xe = x[:, 0]                                    # (TR, WH, 2C)  [x0 | x2]
    xo = x[:, 1]                                    # (TR, WH, 2C)  [x1 | x3]

    # LayerNorm statistics over the full 4C channels of each merged token
    # (f32, two-pass: mean, then centered sum of squares).
    mean = (jnp.sum(xe, axis=-1, keepdims=True)
            + jnp.sum(xo, axis=-1, keepdims=True)) * inv_k
    de = xe - mean
    do = xo - mean
    var = (jnp.sum(de * de, axis=-1, keepdims=True)
           + jnp.sum(do * do, axis=-1, keepdims=True)) * inv_k
    rstd = jax.lax.rsqrt(var + eps)

    tm = o_ref.shape[0]
    c2 = xe.shape[-1]
    ne = (de * rstd).astype(we_ref.dtype).reshape(tm, c2)   # (TM, 2C) bf16
    no = (do * rstd).astype(wo_ref.dtype).reshape(tm, c2)   # (TM, 2C) bf16

    # Two half-K matmuls on the MXU, f32 accumulation; gamma is already folded
    # into the weights, beta @ W is added once on the (4x smaller) output tile.
    acc = jnp.dot(ne, we_ref[...], preferred_element_type=jnp.float32)
    acc = acc + jnp.dot(no, wo_ref[...], preferred_element_type=jnp.float32)
    o_ref[...] = (acc + b_ref[...]).astype(o_ref.dtype)


def _pick_row_tile(bh2, wh, target_tokens):
    """Half-row-pairs per grid step; tokens per step = tr * wh.

    Picks tr that (a) divides bh2 exactly (no pad / no output slice),
    (b) keeps the output row tile sublane-aligned, (c) targets ~target_tokens
    merged tokens per step, and (d) prefers >= 2 grid steps (v7x megacore)
    when that keeps the tile reasonably large.
    """
    upper = max(1, min(bh2, target_tokens // max(wh, 1)))
    tr = bh2                                    # full extent is always legal
    for cand in range(upper, 0, -1):
        if bh2 % cand:
            continue
        if (cand * wh) % 8 and cand != bh2:     # sublane-align the output block
            continue
        tr = cand
        break
    if tr == bh2 and bh2 % 2 == 0:
        half = bh2 // 2
        if half * wh >= 256 and (half * wh) % 8 == 0:
            tr = half
    return tr


def patch_merging(x, ln_weight, ln_bias, proj_weight, input_resolution,
                  eps=1e-5, target_tile_tokens=1024):
    """PatchMerging forward.

    x:           (B, H*W, C)
    ln_weight:   (4C,)     LayerNorm gamma
    ln_bias:     (4C,)     LayerNorm beta
    proj_weight: (4C, 2C)  reduction weight (== torch Linear weight transposed)
    returns:     (B, H*W//4, 2C)
    """
    H, W = input_resolution
    B, L, C = x.shape
    assert L == H * W, "input feature has wrong size"
    assert H % 2 == 0 and W % 2 == 0, f"x size ({H}*{W}) are not even."
    K = 4 * C
    n_out = proj_weight.shape[1]

    wh = W // 2
    bh2 = B * (H // 2)
    M = bh2 * wh                       # number of merged tokens

    # --- Fold LayerNorm affine into the projection (one-time, parameter-sized) ---
    # Permute the K rows of W into the kernel's [x0|x2] / [x1|x3] channel order.
    w_f32 = proj_weight.astype(jnp.float32)
    g = ln_weight.astype(jnp.float32)
    b = ln_bias.astype(jnp.float32)
    w_scaled = w_f32 * g[:, None]                                   # gamma folded
    bias = b[None, :] @ w_f32                                       # (1, N), f32
    w_even = jnp.concatenate([w_scaled[0:C], w_scaled[2 * C:3 * C]],
                             axis=0).astype(jnp.bfloat16)           # [x0 | x2] rows
    w_odd = jnp.concatenate([w_scaled[C:2 * C], w_scaled[3 * C:4 * C]],
                            axis=0).astype(jnp.bfloat16)            # [x1 | x3] rows

    # Free, metadata-only view: (B, H*W, C) -> (B*H/2, 2, W/2, 2C).
    # [:, 0] are even image rows (x0|x2 channels), [:, 1] odd rows (x1|x3).
    x4 = x.reshape(bh2, 2, wh, 2 * C)

    tr = _pick_row_tile(bh2, wh, target_tile_tokens)
    n_m = bh2 // tr
    tm = tr * wh

    # VMEM budget: double-buffered input/output tiles + (double-buffered) weights,
    # plus headroom; capped at 48 MiB so v7x (64 MiB/TC) keeps compiler scratch.
    itemsize = x.dtype.itemsize
    block_in = tr * 2 * wh * 2 * C * itemsize
    block_out = tm * n_out * itemsize
    weight_bytes = 2 * (2 * C) * n_out * 2 + n_out * 4
    vmem_need = 2 * block_in + 2 * block_out + 2 * weight_bytes + (2 << 20)
    vmem_limit = int(min(48 << 20, max(16 << 20, vmem_need)))

    out = pl.pallas_call(
        functools.partial(_merge_ln_proj_kernel, eps=eps, inv_k=1.0 / K),
        out_shape=jax.ShapeDtypeStruct((M, n_out), x.dtype),
        grid_spec=pltpu.PrefetchScalarGridSpec(
            num_scalar_prefetch=0,
            grid=(n_m,),
            in_specs=[
                # activation tile: TR half-row pairs, full (2, W/2, 2C) inner dims
                pl.BlockSpec((tr, 2, wh, 2 * C), lambda i: (i, 0, 0, 0)),
                pl.BlockSpec((2 * C, n_out), lambda i: (0, 0)),   # W_even (resident)
                pl.BlockSpec((2 * C, n_out), lambda i: (0, 0)),   # W_odd  (resident)
                pl.BlockSpec((1, n_out), lambda i: (0, 0)),       # folded bias
            ],
            out_specs=pl.BlockSpec((tm, n_out), lambda i: (i, 0)),
        ),
        compiler_params=pltpu.CompilerParams(
            dimension_semantics=("parallel",),
            vmem_limit_bytes=vmem_limit,
        ),
    )(x4, w_even, w_odd, bias)

    # (B*H/2*W/2, N) -> (B, H/2*W/2, N): contiguous, free reshape.
    return out.reshape(B, (H // 2) * (W // 2), n_out)


def patch_merging_ref(x, ln_weight, ln_bias, proj_weight, input_resolution, eps=1e-5):
    """Pure-JAX f32 reference mirroring the PyTorch forward."""
    H, W = input_resolution
    B, L, C = x.shape
    xr = x.reshape(B, H, W, C)
    x0 = xr[:, 0::2, 0::2, :]
    x1 = xr[:, 1::2, 0::2, :]
    x2 = xr[:, 0::2, 1::2, :]
    x3 = xr[:, 1::2, 1::2, :]
    xm = jnp.concatenate([x0, x1, x2, x3], axis=-1).reshape(B, -1, 4 * C)
    u = jnp.mean(xm, axis=-1, keepdims=True)
    s = jnp.mean((xm - u) ** 2, axis=-1, keepdims=True)
    xn = (xm - u) / jnp.sqrt(s + eps)
    y = xn * ln_weight + ln_bias
    return jnp.dot(y, proj_weight, precision=jax.lax.Precision.HIGHEST)


if __name__ == "__main__":
    key = jax.random.PRNGKey(0)
    kx, kw, kg, kb = jax.random.split(key, 4)

    # Small shapes consistent with the module: B=2, dim=C=4, H=W=16 -> L=256.
    B, H, W, C = 2, 16, 16, 4
    x = jax.random.normal(kx, (B, H * W, C), dtype=jnp.float32)

    # LayerNorm(4C) affine (perturbed from default init to exercise the folding)
    # and Linear(4C -> 2C, no bias).
    ln_weight = 1.0 + 0.1 * jax.random.normal(kg, (4 * C,), dtype=jnp.float32)
    ln_bias = 0.1 * jax.random.normal(kb, (4 * C,), dtype=jnp.float32)
    proj_weight = jax.random.normal(kw, (4 * C, 2 * C), dtype=jnp.float32) * (
        1.0 / jnp.sqrt(4.0 * C))

    y = patch_merging(x, ln_weight, ln_bias, proj_weight, (H, W))
    y = jax.block_until_ready(y)

    y_ref = patch_merging_ref(x, ln_weight, ln_bias, proj_weight, (H, W))
    assert y.shape == (B, (H * W) // 4, 2 * C)
    # bf16 MXU path: loosened tolerance vs the f32/HIGHEST reference.
    assert jnp.allclose(y, y_ref, atol=3e-2, rtol=3e-2), (
        "mismatch vs reference: max_abs_err=%f"
        % float(jnp.max(jnp.abs(y - y_ref))))

    print("KERNEL_OK")
</pallas_src>

<mosaic_0001>
module attributes {stable_mosaic.version = 11 : i64} {
  func.func @_merge_ln_proj_kernel(%arg0: i32, %arg1: memref<16x2x8x8xf32, #tpu.memory_space<vmem>>, %arg2: memref<8x8xbf16, #tpu.memory_space<vmem>>, %arg3: memref<8x8xbf16, #tpu.memory_space<vmem>>, %arg4: memref<1x8xf32, #tpu.memory_space<vmem>>, %arg5: memref<128x8xf32, #tpu.memory_space<vmem>>) attributes {dimension_semantics = [#tpu.dimension_semantics<parallel>], iteration_bounds = array<i64: 1>, scalar_prefetch = 0 : i64, scratch_operands = 0 : i64, tpu.core_type = #tpu.core_type<tc>, window_params = [{transform_indices = @transform_0, window_bounds = array<i64: 16, 2, 8, 8>}, {pipeline_mode = #tpu.pipeline_mode<synchronous>, transform_indices = @transform_1, window_bounds = array<i64: 8, 8>}, {pipeline_mode = #tpu.pipeline_mode<synchronous>, transform_indices = @transform_2, window_bounds = array<i64: 8, 8>}, {pipeline_mode = #tpu.pipeline_mode<synchronous>, transform_indices = @transform_3, window_bounds = array<i64: 1, 8>}, {transform_indices = @transform_4, window_bounds = array<i64: 128, 8>}]} {
    %c0 = arith.constant 0 : index
    %c0_0 = arith.constant 0 : index
    %c0_1 = arith.constant 0 : index
    %c0_2 = arith.constant 0 : index
    %0 = vector.load %arg1[%c0, %c0_0, %c0_1, %c0_2] : memref<16x2x8x8xf32, #tpu.memory_space<vmem>>, vector<16x2x8x8xf32>
    %1 = vector.extract_strided_slice %0 {offsets = [0, 0, 0, 0], sizes = [16, 1, 8, 8], strides = [1, 1, 1, 1]} : vector<16x2x8x8xf32> to vector<16x1x8x8xf32>
    %2 = vector.shape_cast %1 : vector<16x1x8x8xf32> to vector<16x8x8xf32>
    %3 = vector.extract_strided_slice %0 {offsets = [0, 1, 0, 0], sizes = [16, 1, 8, 8], strides = [1, 1, 1, 1]} : vector<16x2x8x8xf32> to vector<16x1x8x8xf32>
    %4 = vector.shape_cast %3 : vector<16x1x8x8xf32> to vector<16x8x8xf32>
    %cst = arith.constant dense<0.000000e+00> : vector<16x8xf32>
    %5 = vector.multi_reduction <add>, %2, %cst [2] : vector<16x8x8xf32> to vector<16x8xf32>
    %6 = vector.shape_cast %5 : vector<16x8xf32> to vector<16x8x1xf32>
    %cst_3 = arith.constant dense<0.000000e+00> : vector<16x8xf32>
    %7 = vector.multi_reduction <add>, %4, %cst_3 [2] : vector<16x8x8xf32> to vector<16x8xf32>
    %8 = vector.shape_cast %7 : vector<16x8xf32> to vector<16x8x1xf32>
    %9 = arith.addf %6, %8 : vector<16x8x1xf32>
    %cst_4 = arith.constant 6.250000e-02 : f32
    %10 = vector.broadcast %cst_4 : f32 to vector<16x8x1xf32>
    %11 = arith.mulf %9, %10 : vector<16x8x1xf32>
    %12 = vector.broadcast %11 : vector<16x8x1xf32> to vector<16x8x8xf32>
    %13 = arith.subf %2, %12 : vector<16x8x8xf32>
    %14 = vector.broadcast %11 : vector<16x8x1xf32> to vector<16x8x8xf32>
    %15 = arith.subf %4, %14 : vector<16x8x8xf32>
    %16 = arith.mulf %13, %13 : vector<16x8x8xf32>
    %cst_5 = arith.constant dense<0.000000e+00> : vector<16x8xf32>
    %17 = vector.multi_reduction <add>, %16, %cst_5 [2] : vector<16x8x8xf32> to vector<16x8xf32>
    %18 = vector.shape_cast %17 : vector<16x8xf32> to vector<16x8x1xf32>
    %19 = arith.mulf %15, %15 : vector<16x8x8xf32>
    %cst_6 = arith.constant dense<0.000000e+00> : vector<16x8xf32>
    %20 = vector.multi_reduction <add>, %19, %cst_6 [2] : vector<16x8x8xf32> to vector<16x8xf32>
    %21 = vector.shape_cast %20 : vector<16x8xf32> to vector<16x8x1xf32>
    %22 = arith.addf %18, %21 : vector<16x8x1xf32>
    %cst_7 = arith.constant 6.250000e-02 : f32
    %23 = vector.broadcast %cst_7 : f32 to vector<16x8x1xf32>
    %24 = arith.mulf %22, %23 : vector<16x8x1xf32>
    %cst_8 = arith.constant 9.99999974E-6 : f32
    %25 = vector.broadcast %cst_8 : f32 to vector<16x8x1xf32>
    %26 = arith.addf %24, %25 : vector<16x8x1xf32>
    %27 = math.rsqrt %26 : vector<16x8x1xf32>
    %28 = vector.broadcast %27 : vector<16x8x1xf32> to vector<16x8x8xf32>
    %29 = arith.mulf %13, %28 : vector<16x8x8xf32>
    %30 = arith.truncf %29 : vector<16x8x8xf32> to vector<16x8x8xbf16>
    %31 = vector.shape_cast %30 : vector<16x8x8xbf16> to vector<128x8xbf16>
    %32 = vector.broadcast %27 : vector<16x8x1xf32> to vector<16x8x8xf32>
    %33 = arith.mulf %15, %32 : vector<16x8x8xf32>
    %34 = arith.truncf %33 : vector<16x8x8xf32> to vector<16x8x8xbf16>
    %35 = vector.shape_cast %34 : vector<16x8x8xbf16> to vector<128x8xbf16>
    %c0_9 = arith.constant 0 : index
    %c0_10 = arith.constant 0 : index
    %36 = vector.load %arg2[%c0_9, %c0_10] : memref<8x8xbf16, #tpu.memory_space<vmem>>, vector<8x8xbf16>
    %cst_11 = arith.constant dense<0.000000e+00> : vector<128x8xf32>
    %37 = tpu.matmul %31, %36, %cst_11 {dimension_numbers = #tpu.dot_dimension_numbers<[1], [0], [0], [1], [0, 0, 1, 1], [], []>} : vector<128x8xbf16>, vector<8x8xbf16>, vector<128x8xf32> -> vector<128x8xf32>
    %c0_12 = arith.constant 0 : index
    %c0_13 = arith.constant 0 : index
    %38 = vector.load %arg3[%c0_12, %c0_13] : memref<8x8xbf16, #tpu.memory_space<vmem>>, vector<8x8xbf16>
    %cst_14 = arith.constant dense<0.000000e+00> : vector<128x8xf32>
    %39 = tpu.matmul %35, %38, %cst_14 {dimension_numbers = #tpu.dot_dimension_numbers<[1], [0], [0], [1], [0, 0, 1, 1], [], []>} : vector<128x8xbf16>, vector<8x8xbf16>, vector<128x8xf32> -> vector<128x8xf32>
    %40 = arith.addf %37, %39 : vector<128x8xf32>
    %c0_15 = arith.constant 0 : index
    %c0_16 = arith.constant 0 : index
    %41 = vector.load %arg4[%c0_15, %c0_16] : memref<1x8xf32, #tpu.memory_space<vmem>>, vector<1x8xf32>
    %42 = vector.broadcast %41 : vector<1x8xf32> to vector<128x8xf32>
    %43 = arith.addf %40, %42 : vector<128x8xf32>
    %c0_17 = arith.constant 0 : index
    %c0_18 = arith.constant 0 : index
    %44 = vector.load %arg5[%c0_17, %c0_18] : memref<128x8xf32, #tpu.memory_space<vmem>>, vector<128x8xf32>
    tpu.vector_store %arg5[%c0_17, %c0_18], %43 {strides = array<i32>} : memref<128x8xf32, #tpu.memory_space<vmem>>, vector<128x8xf32>,
    return
  }
  func.func @transform_0(%arg0: i32) -> (i32, i32, i32, i32) {
    %c0_i32 = arith.constant 0 : i32
    %c0_i32_0 = arith.constant 0 : i32
    %c0_i32_1 = arith.constant 0 : i32
    %c0_i32_2 = arith.constant 0 : i32
    return %arg0, %c0_i32, %c0_i32_0, %c0_i32_1 : i32, i32, i32, i32
  }
  func.func @transform_1(%arg0: i32) -> (i32, i32) {
    %c0_i32 = arith.constant 0 : i32
    %c0_i32_0 = arith.constant 0 : i32
    %c0_i32_1 = arith.constant 0 : i32
    return %c0_i32, %c0_i32_0 : i32, i32
  }
  func.func @transform_2(%arg0: i32) -> (i32, i32) {
    %c0_i32 = arith.constant 0 : i32
    %c0_i32_0 = arith.constant 0 : i32
    %c0_i32_1 = arith.constant 0 : i32
    return %c0_i32, %c0_i32_0 : i32, i32
  }
  func.func @transform_3(%arg0: i32) -> (i32, i32) {
    %c0_i32 = arith.constant 0 : i32
    %c0_i32_0 = arith.constant 0 : i32
    %c0_i32_1 = arith.constant 0 : i32
    return %c0_i32, %c0_i32_0 : i32, i32
  }
  func.func @transform_4(%arg0: i32) -> (i32, i32) {
    %c0_i32 = arith.constant 0 : i32
    %c0_i32_0 = arith.constant 0 : i32
    return %arg0, %c0_i32 : i32, i32
  }
}

</mosaic_0001>

<llo_original>
// kernel: tpu_custom_call.1
$region0: #{tpu_custom_call.1}
  #allocation0 [shape = 'u32[]', space=smem, size = 0x4, offset = 0x4, fixed_abs, tag = 'smem constant byte address 0x4 - core index']
  #allocation1 [shape = 'u32[72,128]{1,0:T(1,128)}', space=vmem, size = 0x9000, scoped, tag = 'internal scratch']
  %s0 = inlined_call_operand.vmem [shape: f32[16,2,8,8], index: 0, kind: input, shape index: {}]
  %s1 = inlined_call_operand.vmem [shape: bf16[8,8], index: 1, kind: input, shape index: {}]
  %s2 = inlined_call_operand.vmem [shape: bf16[8,8], index: 2, kind: input, shape index: {}]
  %s3 = inlined_call_operand.vmem [shape: f32[1,8], index: 3, kind: input, shape index: {}]
  %s4 = inlined_call_operand.vmem [shape: f32[128,8], index: 4, kind: output, shape index: {}]
  %s5 = sld [smem:[#allocation0]]
  $region26: #{tpu_custom_call.1} parent=0
    _
  %s7 = ssub.s32 1, %s5
  %s8 = scalar_select 0, %s7, %s5
  // Predicated region
  $region2: #{tpu_custom_call.1} parent=0 // pred_check
    _
  $region3: #{tpu_custom_call.1} parent=0 // pred_check_branch
    %10 = sbr.rel (0) target = $region5
  $region4: #{tpu_custom_call.1} parent=0 // pred_region
    _
  $region5: #{tpu_custom_call.1} parent=0 // pred_fallthru
    _
  // Predicated region
  $region6: #{tpu_custom_call.1} parent=0 // pred_check
    _
  $region7: #{tpu_custom_call.1} parent=0 // pred_check_branch
    %12 = sbr.rel (0) target = $region9
  $region8: #{tpu_custom_call.1} parent=0 // pred_region
    _
  $region9: #{tpu_custom_call.1} parent=0 // pred_fallthru
    _
  // Predicated region
  $region10: #{tpu_custom_call.1} parent=0 // pred_check
    _
  $region11: #{tpu_custom_call.1} parent=0 // pred_check_branch
    %14 = sbr.rel (0) target = $region13
  $region12: #{tpu_custom_call.1} parent=0 // pred_region
    _
  $region13: #{tpu_custom_call.1} parent=0 // pred_fallthru
    _
  // Predicated region
  $region14: #{tpu_custom_call.1} parent=0 // pred_check
    _
  $region15: #{tpu_custom_call.1} parent=0 // pred_check_branch
    %16 = sbr.rel (0) target = $region17
  $region16: #{tpu_custom_call.1} parent=0 // pred_region
    _
  $region17: #{tpu_custom_call.1} parent=0 // pred_fallthru
    _
  %v18 = vld [vmem:[%s0] sm:$0xff]
  %v19 = vld [vmem:[%s0 + $0x8] sm:$0xff]
  %v20 = vld [vmem:[%s0 + $0x10] sm:$0xff]
  %v21 = vld [vmem:[%s0 + $0x18] sm:$0xff]
  %v22 = vld [vmem:[%s0 + $0x20] sm:$0xff]
  %v23 = vld [vmem:[%s0 + $0x28] sm:$0xff]
  %v24 = vld [vmem:[%s0 + $0x30] sm:$0xff]
  %v25 = vld [vmem:[%s0 + $0x38] sm:$0xff]
  %v26 = vld [vmem:[%s0 + $0x40] sm:$0xff]
  %v27 = vld [vmem:[%s0 + $0x48] sm:$0xff]
  %v28 = vld [vmem:[%s0 + $0x50] sm:$0xff]
  %v29 = vld [vmem:[%s0 + $0x58] sm:$0xff]
  %v30 = vld [vmem:[%s0 + $0x60] sm:$0xff]
  %v31 = vld [vmem:[%s0 + $0x68] sm:$0xff]
  %v32 = vld [vmem:[%s0 + $0x70] sm:$0xff]
  %v33 = vld [vmem:[%s0 + $0x78] sm:$0xff]
  %v34 = vld [vmem:[%s0 + $0x80] sm:$0xff]
  %v35 = vld [vmem:[%s0 + $0x88] sm:$0xff]
  %v36 = vld [vmem:[%s0 + $0x90] sm:$0xff]
  %v37 = vld [vmem:[%s0 + $0x98] sm:$0xff]
  %v38 = vld [vmem:[%s0 + $0xa0] sm:$0xff]
  %v39 = vld [vmem:[%s0 + $0xa8] sm:$0xff]
  %v40 = vld [vmem:[%s0 + $0xb0] sm:$0xff]
  %v41 = vld [vmem:[%s0 + $0xb8] sm:$0xff]
  %v42 = vld [vmem:[%s0 + $0xc0] sm:$0xff]
  %v43 = vld [vmem:[%s0 + $0xc8] sm:$0xff]
  %v44 = vld [vmem:[%s0 + $0xd0] sm:$0xff]
  %v45 = vld [vmem:[%s0 + $0xd8] sm:$0xff]
  %v46 = vld [vmem:[%s0 + $0xe0] sm:$0xff]
  %v47 = vld [vmem:[%s0 + $0xe8] sm:$0xff]
  %v48 = vld [vmem:[%s0 + $0xf0] sm:$0xff]
  %v49 = vld [vmem:[%s0 + $0xf8] sm:$0xff]
  %vm50 = vcmask 64512
  %v51 = vsel %vm50, %v18, 0.0
  %52 = vadd.xlane.f32.xlu0 %v51
  %v53 = vpop.xlane.xlu0 %52
  %v54 = vsel %vm50, %v20, 0.0
  %55 = vadd.xlane.f32.xlu0 %v54
  %v56 = vpop.xlane.xlu0 %55
  %v57 = vsel %vm50, %v22, 0.0
  %58 = vadd.xlane.f32.xlu0 %v57
  %v59 = vpop.xlane.xlu0 %58
  %v60 = vsel %vm50, %v24, 0.0
  %61 = vadd.xlane.f32.xlu0 %v60
  %v62 = vpop.xlane.xlu0 %61
  %v63 = vsel %vm50, %v26, 0.0
  %64 = vadd.xlane.f32.xlu0 %v63
  %v65 = vpop.xlane.xlu0 %64
  %v66 = vsel %vm50, %v28, 0.0
  %67 = vadd.xlane.f32.xlu0 %v66
  %v68 = vpop.xlane.xlu0 %67
  %v69 = vsel %vm50, %v30, 0.0
  %70 = vadd.xlane.f32.xlu0 %v69
  %v71 = vpop.xlane.xlu0 %70
  %v72 = vsel %vm50, %v32, 0.0
  %73 = vadd.xlane.f32.xlu0 %v72
  %v74 = vpop.xlane.xlu0 %73
  %v75 = vsel %vm50, %v34, 0.0
  %76 = vadd.xlane.f32.xlu0 %v75
  %v77 = vpop.xlane.xlu0 %76
  %v78 = vsel %vm50, %v36, 0.0
  %79 = vadd.xlane.f32.xlu0 %v78
  %v80 = vpop.xlane.xlu0 %79
  %v81 = vsel %vm50, %v38, 0.0
  %82 = vadd.xlane.f32.xlu0 %v81
  %v83 = vpop.xlane.xlu0 %82
  %v84 = vsel %vm50, %v40, 0.0
  %85 = vadd.xlane.f32.xlu0 %v84
  %v86 = vpop.xlane.xlu0 %85
  %v87 = vsel %vm50, %v42, 0.0
  %88 = vadd.xlane.f32.xlu0 %v87
  %v89 = vpop.xlane.xlu0 %88
  %v90 = vsel %vm50, %v44, 0.0
  %91 = vadd.xlane.f32.xlu0 %v90
  %v92 = vpop.xlane.xlu0 %91
  %v93 = vsel %vm50, %v46, 0.0
  %94 = vadd.xlane.f32.xlu0 %v93
  %v95 = vpop.xlane.xlu0 %94
  %v96 = vsel %vm50, %v48, 0.0
  %97 = vadd.xlane.f32.xlu0 %v96
  %v98 = vpop.xlane.xlu0 %97
  %v99 = vsel %vm50, %v19, 0.0
  %100 = vadd.xlane.f32.xlu0 %v99
  %v101 = vpop.xlane.xlu0 %100
  %v102 = vsel %vm50, %v21, 0.0
  %103 = vadd.xlane.f32.xlu0 %v102
  %v104 = vpop.xlane.xlu0 %103
  %v105 = vsel %vm50, %v23, 0.0
  %106 = vadd.xlane.f32.xlu0 %v105
  %v107 = vpop.xlane.xlu0 %106
  %v108 = vsel %vm50, %v25, 0.0
  %109 = vadd.xlane.f32.xlu0 %v108
  %v110 = vpop.xlane.xlu0 %109
  %v111 = vsel %vm50, %v27, 0.0
  %112 = vadd.xlane.f32.xlu0 %v111
  %v113 = vpop.xlane.xlu0 %112
  %v114 = vsel %vm50, %v29, 0.0
  %115 = vadd.xlane.f32.xlu0 %v114
  %v116 = vpop.xlane.xlu0 %115
  %v117 = vsel %vm50, %v31, 0.0
  %118 = vadd.xlane.f32.xlu0 %v117
  %v119 = vpop.xlane.xlu0 %118
  %v120 = vsel %vm50, %v33, 0.0
  %121 = vadd.xlane.f32.xlu0 %v120
  %v122 = vpop.xlane.xlu0 %121
  %v123 = vsel %vm50, %v35, 0.0
  %124 = vadd.xlane.f32.xlu0 %v123
  %v125 = vpop.xlane.xlu0 %124
  %v126 = vsel %vm50, %v37, 0.0
  %127 = vadd.xlane.f32.xlu0 %v126
  %v128 = vpop.xlane.xlu0 %127
  %v129 = vsel %vm50, %v39, 0.0
  %130 = vadd.xlane.f32.xlu0 %v129
  %v131 = vpop.xlane.xlu0 %130
  %v132 = vsel %vm50, %v41, 0.0
  %133 = vadd.xlane.f32.xlu0 %v132
  %v134 = vpop.xlane.xlu0 %133
  %v135 = vsel %vm50, %v43, 0.0
  %136 = vadd.xlane.f32.xlu0 %v135
  %v137 = vpop.xlane.xlu0 %136
  %v138 = vsel %vm50, %v45, 0.0
  %139 = vadd.xlane.f32.xlu0 %v138
  %v140 = vpop.xlane.xlu0 %139
  %v141 = vsel %vm50, %v47, 0.0
  %142 = vadd.xlane.f32.xlu0 %v141
  %v143 = vpop.xlane.xlu0 %142
  %v144 = vsel %vm50, %v49, 0.0
  %145 = vadd.xlane.f32.xlu0 %v144
  %v146 = vpop.xlane.xlu0 %145
  %v147 = vadd.f32 %v53, %v101
  %v148 = vadd.f32 %v56, %v104
  %v149 = vadd.f32 %v59, %v107
  %v150 = vadd.f32 %v62, %v110
  %v151 = vadd.f32 %v65, %v113
  %v152 = vadd.f32 %v68, %v116
  %v153 = vadd.f32 %v71, %v119
  %v154 = vadd.f32 %v74, %v122
  %v155 = vadd.f32 %v77, %v125
  %v156 = vadd.f32 %v80, %v128
  %v157 = vadd.f32 %v83, %v131
  %v158 = vadd.f32 %v86, %v134
  %v159 = vadd.f32 %v89, %v137
  %v160 = vadd.f32 %v92, %v140
  %v161 = vadd.f32 %v95, %v143
  %v162 = vadd.f32 %v98, %v146
  %v163 = vmul.f32 %v147, 0.0625
  %v164 = vmul.f32 %v148, 0.0625
  %v165 = vmul.f32 %v149, 0.0625
  %v166 = vmul.f32 %v150, 0.0625
  %v167 = vmul.f32 %v151, 0.0625
  %v168 = vmul.f32 %v152, 0.0625
  %v169 = vmul.f32 %v153, 0.0625
  %v170 = vmul.f32 %v154, 0.0625
  %v171 = vmul.f32 %v155, 0.0625
  %v172 = vmul.f32 %v156, 0.0625
  %v173 = vmul.f32 %v157, 0.0625
  %v174 = vmul.f32 %v158, 0.0625
  %v175 = vmul.f32 %v159, 0.0625
  %v176 = vmul.f32 %v160, 0.0625
  %v177 = vmul.f32 %v161, 0.0625
  %v178 = vmul.f32 %v162, 0.0625
  %v179 = vsub.f32 %v18, %v163
  %v180 = vsub.f32 %v20, %v164
  %v181 = vsub.f32 %v22, %v165
  %v182 = vsub.f32 %v24, %v166
  %v183 = vsub.f32 %v26, %v167
  %v184 = vsub.f32 %v28, %v168
  %v185 = vsub.f32 %v30, %v169
  %v186 = vsub.f32 %v32, %v170
  %v187 = vsub.f32 %v34, %v171
  %v188 = vsub.f32 %v36, %v172
  %v189 = vsub.f32 %v38, %v173
  %v190 = vsub.f32 %v40, %v174
  %v191 = vsub.f32 %v42, %v175
  %v192 = vsub.f32 %v44, %v176
  %v193 = vsub.f32 %v46, %v177
  %v194 = vsub.f32 %v48, %v178
  %v195 = vsub.f32 %v19, %v163
  %v196 = vsub.f32 %v21, %v164
  %v197 = vsub.f32 %v23, %v165
  %v198 = vsub.f32 %v25, %v166
  %v199 = vsub.f32 %v27, %v167
  %v200 = vsub.f32 %v29, %v168
  %v201 = vsub.f32 %v31, %v169
  %v202 = vsub.f32 %v33, %v170
  %v203 = vsub.f32 %v35, %v171
  %v204 = vsub.f32 %v37, %v172
  %v205 = vsub.f32 %v39, %v173
  %v206 = vsub.f32 %v41, %v174
  %v207 = vsub.f32 %v43, %v175
  %v208 = vsub.f32 %v45, %v176
  %v209 = vsub.f32 %v47, %v177
  %v210 = vsub.f32 %v49, %v178
  %v211 = vmul.f32 %v179, %v179
  %v212 = vmul.f32 %v180, %v180
  %v213 = vmul.f32 %v181, %v181
  %v214 = vmul.f32 %v182, %v182
  %v215 = vmul.f32 %v183, %v183
  %v216 = vmul.f32 %v184, %v184
  %v217 = vmul.f32 %v185, %v185
  %v218 = vmul.f32 %v186, %v186
  %v219 = vmul.f32 %v187, %v187
  %v220 = vmul.f32 %v188, %v188
  %v221 = vmul.f32 %v189, %v189
  %v222 = vmul.f32 %v190, %v190
  %v223 = vmul.f32 %v191, %v191
  %v224 = vmul.f32 %v192, %v192
  %v225 = vmul.f32 %v193, %v193
  %v226 = vmul.f32 %v194, %v194
  %v227 = vsel %vm50, %v211, 0.0
  %228 = vadd.xlane.f32.xlu0 %v227
  %v229 = vpop.xlane.xlu0 %228
  %v230 = vsel %vm50, %v212, 0.0
  %231 = vadd.xlane.f32.xlu0 %v230
  %v232 = vpop.xlane.xlu0 %231
  %v233 = vsel %vm50, %v213, 0.0
  %234 = vadd.xlane.f32.xlu0 %v233
  %v235 = vpop.xlane.xlu0 %234
  %v236 = vsel %vm50, %v214, 0.0
  %237 = vadd.xlane.f32.xlu0 %v236
  %v238 = vpop.xlane.xlu0 %237
  %v239 = vsel %vm50, %v215, 0.0
  %240 = vadd.xlane.f32.xlu0 %v239
  %v241 = vpop.xlane.xlu0 %240
  %v242 = vsel %vm50, %v216, 0.0
  %243 = vadd.xlane.f32.xlu0 %v242
  %v244 = vpop.xlane.xlu0 %243
  %v245 = vsel %vm50, %v217, 0.0
  %246 = vadd.xlane.f32.xlu0 %v245
  %v247 = vpop.xlane.xlu0 %246
  %v248 = vsel %vm50, %v218, 0.0
  %249 = vadd.xlane.f32.xlu0 %v248
  %v250 = vpop.xlane.xlu0 %249
  %v251 = vsel %vm50, %v219, 0.0
  %252 = vadd.xlane.f32.xlu0 %v251
  %v253 = vpop.xlane.xlu0 %252
  %v254 = vsel %vm50, %v220, 0.0
  %255 = vadd.xlane.f32.xlu0 %v254
  %v256 = vpop.xlane.xlu0 %255
  %v257 = vsel %vm50, %v221, 0.0
  %258 = vadd.xlane.f32.xlu0 %v257
  %v259 = vpop.xlane.xlu0 %258
  %v260 = vsel %vm50, %v222, 0.0
  %261 = vadd.xlane.f32.xlu0 %v260
  %v262 = vpop.xlane.xlu0 %261
  %v263 = vsel %vm50, %v223, 0.0
  %264 = vadd.xlane.f32.xlu0 %v263
  %v265 = vpop.xlane.xlu0 %264
  %v266 = vsel %vm50, %v224, 0.0
  %267 = vadd.xlane.f32.xlu0 %v266
  %v268 = vpop.xlane.xlu0 %267
  %v269 = vsel %vm50, %v225, 0.0
  %270 = vadd.xlane.f32.xlu0 %v269
  %v271 = vpop.xlane.xlu0 %270
  %v272 = vsel %vm50, %v226, 0.0
  %273 = vadd.xlane.f32.xlu0 %v272
  %v274 = vpop.xlane.xlu0 %273
  %v275 = vmul.f32 %v195, %v195
  %v276 = vmul.f32 %v196, %v196
  %v277 = vmul.f32 %v197, %v197
  %v278 = vmul.f32 %v198, %v198
  %v279 = vmul.f32 %v199, %v199
  %v280 = vmul.f32 %v200, %v200
  %v281 = vmul.f32 %v201, %v201
  %v282 = vmul.f32 %v202, %v202
  %v283 = vmul.f32 %v203, %v203
  %v284 = vmul.f32 %v204, %v204
  %v285 = vmul.f32 %v205, %v205
  %v286 = vmul.f32 %v206, %v206
  %v287 = vmul.f32 %v207, %v207
  %v288 = vmul.f32 %v208, %v208
  %v289 = vmul.f32 %v209, %v209
  %v290 = vmul.f32 %v210, %v210
  %v291 = vsel %vm50, %v275, 0.0
  %292 = vadd.xlane.f32.xlu0 %v291
  %v293 = vpop.xlane.xlu0 %292
  %v294 = vsel %vm50, %v276, 0.0
  %295 = vadd.xlane.f32.xlu0 %v294
  %v296 = vpop.xlane.xlu0 %295
  %v297 = vsel %vm50, %v277, 0.0
  %298 = vadd.xlane.f32.xlu0 %v297
  %v299 = vpop.xlane.xlu0 %298
  %v300 = vsel %vm50, %v278, 0.0
  %301 = vadd.xlane.f32.xlu0 %v300
  %v302 = vpop.xlane.xlu0 %301
  %v303 = vsel %vm50, %v279, 0.0
  %304 = vadd.xlane.f32.xlu0 %v303
  %v305 = vpop.xlane.xlu0 %304
  %v306 = vsel %vm50, %v280, 0.0
  %307 = vadd.xlane.f32.xlu0 %v306
  %v308 = vpop.xlane.xlu0 %307
  %v309 = vsel %vm50, %v281, 0.0
  %310 = vadd.xlane.f32.xlu0 %v309
  %v311 = vpop.xlane.xlu0 %310
  %v312 = vsel %vm50, %v282, 0.0
  %313 = vadd.xlane.f32.xlu0 %v312
  %v314 = vpop.xlane.xlu0 %313
  %v315 = vsel %vm50, %v283, 0.0
  %316 = vadd.xlane.f32.xlu0 %v315
  %v317 = vpop.xlane.xlu0 %316
  %v318 = vsel %vm50, %v284, 0.0
  %319 = vadd.xlane.f32.xlu0 %v318
  %v320 = vpop.xlane.xlu0 %319
  %v321 = vsel %vm50, %v285, 0.0
  %322 = vadd.xlane.f32.xlu0 %v321
  %v323 = vpop.xlane.xlu0 %322
  %v324 = vsel %vm50, %v286, 0.0
  %325 = vadd.xlane.f32.xlu0 %v324
  %v326 = vpop.xlane.xlu0 %325
  %v327 = vsel %vm50, %v287, 0.0
  %328 = vadd.xlane.f32.xlu0 %v327
  %v329 = vpop.xlane.xlu0 %328
  %v330 = vsel %vm50, %v288, 0.0
  %331 = vadd.xlane.f32.xlu0 %v330
  %v332 = vpop.xlane.xlu0 %331
  %v333 = vsel %vm50, %v289, 0.0
  %334 = vadd.xlane.f32.xlu0 %v333
  %v335 = vpop.xlane.xlu0 %334
  %v336 = vsel %vm50, %v290, 0.0
  %337 = vadd.xlane.f32.xlu0 %v336
  %v338 = vpop.xlane.xlu0 %337
  %v339 = vadd.f32 %v229, %v293
  %v340 = vadd.f32 %v232, %v296
  %v341 = vadd.f32 %v235, %v299
  %v342 = vadd.f32 %v238, %v302
  %v343 = vadd.f32 %v241, %v305
  %v344 = vadd.f32 %v244, %v308
  %v345 = vadd.f32 %v247, %v311
  %v346 = vadd.f32 %v250, %v314
  %v347 = vadd.f32 %v253, %v317
  %v348 = vadd.f32 %v256, %v320
  %v349 = vadd.f32 %v259, %v323
  %v350 = vadd.f32 %v262, %v326
  %v351 = vadd.f32 %v265, %v329
  %v352 = vadd.f32 %v268, %v332
  %v353 = vadd.f32 %v271, %v335
  %v354 = vadd.f32 %v274, %v338
  %v355 = vmul.f32 %v339, 0.0625
  %v356 = vmul.f32 %v340, 0.0625
  %v357 = vmul.f32 %v341, 0.0625
  %v358 = vmul.f32 %v342, 0.0625
  %v359 = vmul.f32 %v343, 0.0625
  %v360 = vmul.f32 %v344, 0.0625
  %v361 = vmul.f32 %v345, 0.0625
  %v362 = vmul.f32 %v346, 0.0625
  %v363 = vmul.f32 %v347, 0.0625
  %v364 = vmul.f32 %v348, 0.0625
  %v365 = vmul.f32 %v349, 0.0625
  %v366 = vmul.f32 %v350, 0.0625
  %v367 = vmul.f32 %v351, 0.0625
  %v368 = vmul.f32 %v352, 0.0625
  %v369 = vmul.f32 %v353, 0.0625
  %v370 = vmul.f32 %v354, 0.0625
  %v371 = vadd.f32 %v355, 1e-05
  %v372 = vadd.f32 %v356, 1e-05
  %v373 = vadd.f32 %v357, 1e-05
  %v374 = vadd.f32 %v358, 1e-05
  %v375 = vadd.f32 %v359, 1e-05
  %v376 = vadd.f32 %v360, 1e-05
  %v377 = vadd.f32 %v361, 1e-05
  %v378 = vadd.f32 %v362, 1e-05
  %v379 = vadd.f32 %v363, 1e-05
  %v380 = vadd.f32 %v364, 1e-05
  %v381 = vadd.f32 %v365, 1e-05
  %v382 = vadd.f32 %v366, 1e-05
  %v383 = vadd.f32 %v367, 1e-05
  %v384 = vadd.f32 %v368, 1e-05
  %v385 = vadd.f32 %v369, 1e-05
  %v386 = vadd.f32 %v370, 1e-05
  %v387 = vrsqrt.pop %v371
  %v388 = vmul.f32 %v387, %v371
  %v389 = vmul.f32 %v388, %v387
  %v390 = vmul.f32 0.5, %v389
  %v391 = vsub.f32 1.5, %v390
  %v392 = vmul.f32 %v387, %v391
  %vm393 = vweird.f32 %v371
  %vm394 = vweird.f32 %v387
  %vm395 = vmor %vm393, %vm394
  %v396 = vsel %vm395, %v387, %v392
  %v397 = vrsqrt.pop %v372
  %v398 = vmul.f32 %v397, %v372
  %v399 = vmul.f32 %v398, %v397
  %v400 = vmul.f32 0.5, %v399
  %v401 = vsub.f32 1.5, %v400
  %v402 = vmul.f32 %v397, %v401
  %vm403 = vweird.f32 %v372
  %vm404 = vweird.f32 %v397
  %vm405 = vmor %vm403, %vm404
  %v406 = vsel %vm405, %v397, %v402
  %v407 = vrsqrt.pop %v373
  %v408 = vmul.f32 %v407, %v373
  %v409 = vmul.f32 %v408, %v407
  %v410 = vmul.f32 0.5, %v409
  %v411 = vsub.f32 1.5, %v410
  %v412 = vmul.f32 %v407, %v411
  %vm413 = vweird.f32 %v373
  %vm414 = vweird.f32 %v407
  %vm415 = vmor %vm413, %vm414
  %v416 = vsel %vm415, %v407, %v412
  %v417 = vrsqrt.pop %v374
  %v418 = vmul.f32 %v417, %v374
  %v419 = vmul.f32 %v418, %v417
  %v420 = vmul.f32 0.5, %v419
  %v421 = vsub.f32 1.5, %v420
  %v422 = vmul.f32 %v417, %v421
  %vm423 = vweird.f32 %v374
  %vm424 = vweird.f32 %v417
  %vm425 = vmor %vm423, %vm424
  %v426 = vsel %vm425, %v417, %v422
  %v427 = vrsqrt.pop %v375
  %v428 = vmul.f32 %v427, %v375
  %v429 = vmul.f32 %v428, %v427
  %v430 = vmul.f32 0.5, %v429
  %v431 = vsub.f32 1.5, %v430
  %v432 = vmul.f32 %v427, %v431
  %vm433 = vweird.f32 %v375
  %vm434 = vweird.f32 %v427
  %vm435 = vmor %vm433, %vm434
  %v436 = vsel %vm435, %v427, %v432
  %v437 = vrsqrt.pop %v376
  %v438 = vmul.f32 %v437, %v376
  %v439 = vmul.f32 %v438, %v437
  %v440 = vmul.f32 0.5, %v439
  %v441 = vsub.f32 1.5, %v440
  %v442 = vmul.f32 %v437, %v441
  %vm443 = vweird.f32 %v376
  %vm444 = vweird.f32 %v437
  %vm445 = vmor %vm443, %vm444
  %v446 = vsel %vm445, %v437, %v442
  %v447 = vrsqrt.pop %v377
  %v448 = vmul.f32 %v447, %v377
  %v449 = vmul.f32 %v448, %v447
  %v450 = vmul.f32 0.5, %v449
  %v451 = vsub.f32 1.5, %v450
  %v452 = vmul.f32 %v447, %v451
  %vm453 = vweird.f32 %v377
  %vm454 = vweird.f32 %v447
  %vm455 = vmor %vm453, %vm454
  %v456 = vsel %vm455, %v447, %v452
  %v457 = vrsqrt.pop %v378
  %v458 = vmul.f32 %v457, %v378
  %v459 = vmul.f32 %v458, %v457
  %v460 = vmul.f32 0.5, %v459
  %v461 = vsub.f32 1.5, %v460
  %v462 = vmul.f32 %v457, %v461
  %vm463 = vweird.f32 %v378
  %vm464 = vweird.f32 %v457
  %vm465 = vmor %vm463, %vm464
  %v466 = vsel %vm465, %v457, %v462
  %v467 = vrsqrt.pop %v379
  %v468 = vmul.f32 %v467, %v379
  %v469 = vmul.f32 %v468, %v467
  %v470 = vmul.f32 0.5, %v469
  %v471 = vsub.f32 1.5, %v470
  %v472 = vmul.f32 %v467, %v471
  %vm473 = vweird.f32 %v379
  %vm474 = vweird.f32 %v467
  %vm475 = vmor %vm473, %vm474
  %v476 = vsel %vm475, %v467, %v472
  %v477 = vrsqrt.pop %v380
  %v478 = vmul.f32 %v477, %v380
  %v479 = vmul.f32 %v478, %v477
  %v480 = vmul.f32 0.5, %v479
  %v481 = vsub.f32 1.5, %v480
  %v482 = vmul.f32 %v477, %v481
  %vm483 = vweird.f32 %v380
  %vm484 = vweird.f32 %v477
  %vm485 = vmor %vm483, %vm484
  %v486 = vsel %vm485, %v477, %v482
  %v487 = vrsqrt.pop %v381
  %v488 = vmul.f32 %v487, %v381
  %v489 = vmul.f32 %v488, %v487
  %v490 = vmul.f32 0.5, %v489
  %v491 = vsub.f32 1.5, %v490
  %v492 = vmul.f32 %v487, %v491
  %vm493 = vweird.f32 %v381
  %vm494 = vweird.f32 %v487
  %vm495 = vmor %vm493, %vm494
  %v496 = vsel %vm495, %v487, %v492
  %v497 = vrsqrt.pop %v382
  %v498 = vmul.f32 %v497, %v382
  %v499 = vmul.f32 %v498, %v497
  %v500 = vmul.f32 0.5, %v499
  %v501 = vsub.f32 1.5, %v500
  %v502 = vmul.f32 %v497, %v501
  %vm503 = vweird.f32 %v382
  %vm504 = vweird.f32 %v497
  %vm505 = vmor %vm503, %vm504
  %v506 = vsel %vm505, %v497, %v502
  %v507 = vrsqrt.pop %v383
  %v508 = vmul.f32 %v507, %v383
  %v509 = vmul.f32 %v508, %v507
  %v510 = vmul.f32 0.5, %v509
  %v511 = vsub.f32 1.5, %v510
  %v512 = vmul.f32 %v507, %v511
  %vm513 = vweird.f32 %v383
  %vm514 = vweird.f32 %v507
  %vm515 = vmor %vm513, %vm514
  %v516 = vsel %vm515, %v507, %v512
  %v517 = vrsqrt.pop %v384
  %v518 = vmul.f32 %v517, %v384
  %v519 = vmul.f32 %v518, %v517
  %v520 = vmul.f32 0.5, %v519
  %v521 = vsub.f32 1.5, %v520
  %v522 = vmul.f32 %v517, %v521
  %vm523 = vweird.f32 %v384
  %vm524 = vweird.f32 %v517
  %vm525 = vmor %vm523, %vm524
  %v526 = vsel %vm525, %v517, %v522
  %v527 = vrsqrt.pop %v385
  %v528 = vmul.f32 %v527, %v385
  %v529 = vmul.f32 %v528, %v527
  %v530 = vmul.f32 0.5, %v529
  %v531 = vsub.f32 1.5, %v530
  %v532 = vmul.f32 %v527, %v531
  %vm533 = vweird.f32 %v385
  %vm534 = vweird.f32 %v527
  %vm535 = vmor %vm533, %vm534
  %v536 = vsel %vm535, %v527, %v532
  %v537 = vrsqrt.pop %v386
  %v538 = vmul.f32 %v537, %v386
  %v539 = vmul.f32 %v538, %v537
  %v540 = vmul.f32 0.5, %v539
  %v541 = vsub.f32 1.5, %v540
  %v542 = vmul.f32 %v537, %v541
  %vm543 = vweird.f32 %v386
  %vm544 = vweird.f32 %v537
  %vm545 = vmor %vm543, %vm544
  %v546 = vsel %vm545, %v537, %v542
  %v547 = vmul.f32 %v179, %v396
  %v548 = vmul.f32 %v180, %v406
  %v549 = vmul.f32 %v181, %v416
  %v550 = vmul.f32 %v182, %v426
  %v551 = vmul.f32 %v183, %v436
  %v552 = vmul.f32 %v184, %v446
  %v553 = vmul.f32 %v185, %v456
  %v554 = vmul.f32 %v186, %v466
  %v555 = vmul.f32 %v187, %v476
  %v556 = vmul.f32 %v188, %v486
  %v557 = vmul.f32 %v189, %v496
  %v558 = vmul.f32 %v190, %v506
  %v559 = vmul.f32 %v191, %v516
  %v560 = vmul.f32 %v192, %v526
  %v561 = vmul.f32 %v193, %v536
  %v562 = vmul.f32 %v194, %v546
  %v563 = vpack.c.bf16 %v547, %v547
  %v564 = vpack.c.bf16 %v548, %v548
  %v565 = vpack.c.bf16 %v549, %v549
  %v566 = vpack.c.bf16 %v550, %v550
  %v567 = vpack.c.bf16 %v551, %v551
  %v568 = vpack.c.bf16 %v552, %v552
  %v569 = vpack.c.bf16 %v553, %v553
  %v570 = vpack.c.bf16 %v554, %v554
  %v571 = vpack.c.bf16 %v555, %v555
  %v572 = vpack.c.bf16 %v556, %v556
  %v573 = vpack.c.bf16 %v557, %v557
  %v574 = vpack.c.bf16 %v558, %v558
  %v575 = vpack.c.bf16 %v559, %v559
  %v576 = vpack.c.bf16 %v560, %v560
  %v577 = vpack.c.bf16 %v561, %v561
  %v578 = vpack.c.bf16 %v562, %v562
  %v579 = vmul.f32 %v195, %v396
  %v580 = vmul.f32 %v196, %v406
  %v581 = vmul.f32 %v197, %v416
  %v582 = vmul.f32 %v198, %v426
  %v583 = vmul.f32 %v199, %v436
  %v584 = vmul.f32 %v200, %v446
  %v585 = vmul.f32 %v201, %v456
  %v586 = vmul.f32 %v202, %v466
  %v587 = vmul.f32 %v203, %v476
  %v588 = vmul.f32 %v204, %v486
  %v589 = vmul.f32 %v205, %v496
  %v590 = vmul.f32 %v206, %v506
  %v591 = vmul.f32 %v207, %v516
  %v592 = vmul.f32 %v208, %v526
  %v593 = vmul.f32 %v209, %v536
  %v594 = vmul.f32 %v210, %v546
  %v595 = vpack.c.bf16 %v579, %v579
  %v596 = vpack.c.bf16 %v580, %v580
  %v597 = vpack.c.bf16 %v581, %v581
  %v598 = vpack.c.bf16 %v582, %v582
  %v599 = vpack.c.bf16 %v583, %v583
  %v600 = vpack.c.bf16 %v584, %v584
  %v601 = vpack.c.bf16 %v585, %v585
  %v602 = vpack.c.bf16 %v586, %v586
  %v603 = vpack.c.bf16 %v587, %v587
  %v604 = vpack.c.bf16 %v588, %v588
  %v605 = vpack.c.bf16 %v589, %v589
  %v606 = vpack.c.bf16 %v590, %v590
  %v607 = vpack.c.bf16 %v591, %v591
  %v608 = vpack.c.bf16 %v592, %v592
  %v609 = vpack.c.bf16 %v593, %v593
  %v610 = vpack.c.bf16 %v594, %v594
  %v611 = vld [vmem:[%s1] sm:$0xf]
  %v612 = vld [vmem:[%s2] sm:$0xf]
  %v629 = vunpack.c.l.b16 %v595
  %v630 = vunpack.c.l.b16 %v596
  %v631 = vunpack.c.l.b16 %v597
  %v632 = vunpack.c.l.b16 %v598
  %v633 = vunpack.c.l.b16 %v599
  %v634 = vunpack.c.l.b16 %v600
  %v635 = vunpack.c.l.b16 %v601
  %v636 = vunpack.c.l.b16 %v602
  %v637 = vunpack.c.l.b16 %v603
  %v638 = vunpack.c.l.b16 %v604
  %v639 = vunpack.c.l.b16 %v605
  %v640 = vunpack.c.l.b16 %v606
  %v641 = vunpack.c.l.b16 %v607
  %v642 = vunpack.c.l.b16 %v608
  %v643 = vunpack.c.l.b16 %v609
  %v644 = vunpack.c.l.b16 %v610
  %v645 = vpack.c.b16 %v630, %v629
  %v646 = vpack.c.b16 %v632, %v631
  %v647 = vpack.c.b16 %v634, %v633
  %v648 = vpack.c.b16 %v636, %v635
  %v649 = vpack.c.b16 %v638, %v637
  %v650 = vpack.c.b16 %v640, %v639
  %v651 = vpack.c.b16 %v642, %v641
  %v652 = vpack.c.b16 %v644, %v643
  %v654 = vsel %vm50, %v645, 0
  %v657 = vsel %vm50, %v646, 0
  %v660 = vsel %vm50, %v647, 0
  %v663 = vsel %vm50, %v648, 0
  %v666 = vsel %vm50, %v649, 0
  %v669 = vsel %vm50, %v650, 0
  %v672 = vsel %vm50, %v651, 0
  %v675 = vsel %vm50, %v652, 0
  %vm677 = vcmask 1043456
  %v679 = vsel %vm677, %v612, 0
  %681 = vmatpush.bf16.msra.mxu0 0
  %682 = vmatpush.bf16.msra.mxu0 0
  %683 = vmatpush.bf16.msra.mxu0 0
  %684 = vmatpush.bf16.msra.mxu0 0
  %685 = vmatpush.bf16.msra.mxu0 0
  %686 = vmatpush.bf16.msra.mxu0 0
  %687 = vmatpush.bf16.msra.mxu0 0
  %688 = vmatpush.bf16.msra.mxu0 %v679
  %689 = vmatmul.bf16.gmra.mxu0 %v654
  %v690 = vpop.f32.mrf.mxu0
  %v691 = vadd.f32 0.0, %v690
  %v692 = vpop.f32.mrf.mxu0
  %v693 = vadd.f32 0.0, %v692
  %694 = vmatmul.bf16.gmra.mxu0 %v657
  %v695 = vpop.f32.mrf.mxu0
  %v696 = vadd.f32 0.0, %v695
  %v697 = vpop.f32.mrf.mxu0
  %v698 = vadd.f32 0.0, %v697
  %699 = vmatmul.bf16.gmra.mxu0 %v660
  %v700 = vpop.f32.mrf.mxu0
  %v701 = vadd.f32 0.0, %v700
  %v702 = vpop.f32.mrf.mxu0
  %v703 = vadd.f32 0.0, %v702
  %704 = vmatmul.bf16.gmra.mxu0 %v663
  %v705 = vpop.f32.mrf.mxu0
  %v706 = vadd.f32 0.0, %v705
  %v707 = vpop.f32.mrf.mxu0
  %v708 = vadd.f32 0.0, %v707
  %709 = vmatmul.bf16.gmra.mxu0 %v666
  %v710 = vpop.f32.mrf.mxu0
  %v711 = vadd.f32 0.0, %v710
  %v712 = vpop.f32.mrf.mxu0
  %v713 = vadd.f32 0.0, %v712
  %714 = vmatmul.bf16.gmra.mxu0 %v669
  %v715 = vpop.f32.mrf.mxu0
  %v716 = vadd.f32 0.0, %v715
  %v717 = vpop.f32.mrf.mxu0
  %v718 = vadd.f32 0.0, %v717
  %719 = vmatmul.bf16.gmra.mxu0 %v672
  %v720 = vpop.f32.mrf.mxu0
  %v721 = vadd.f32 0.0, %v720
  %v722 = vpop.f32.mrf.mxu0
  %v723 = vadd.f32 0.0, %v722
  %724 = vmatmul.bf16.gmra.mxu0 %v675
  %v725 = vpop.f32.mrf.mxu0
  %v726 = vadd.f32 0.0, %v725
  %v727 = vpop.f32.mrf.mxu0
  %v728 = vadd.f32 0.0, %v727
  %729 = vdwg.mxu0
  %v746 = vunpack.c.l.b16 %v563
  %v747 = vunpack.c.l.b16 %v564
  %v748 = vunpack.c.l.b16 %v565
  %v749 = vunpack.c.l.b16 %v566
  %v750 = vunpack.c.l.b16 %v567
  %v751 = vunpack.c.l.b16 %v568
  %v752 = vunpack.c.l.b16 %v569
  %v753 = vunpack.c.l.b16 %v570
  %v754 = vunpack.c.l.b16 %v571
  %v755 = vunpack.c.l.b16 %v572
  %v756 = vunpack.c.l.b16 %v573
  %v757 = vunpack.c.l.b16 %v574
  %v758 = vunpack.c.l.b16 %v575
  %v759 = vunpack.c.l.b16 %v576
  %v760 = vunpack.c.l.b16 %v577
  %v761 = vunpack.c.l.b16 %v578
  %v762 = vpack.c.b16 %v747, %v746
  %v763 = vpack.c.b16 %v749, %v748
  %v764 = vpack.c.b16 %v751, %v750
  %v765 = vpack.c.b16 %v753, %v752
  %v766 = vpack.c.b16 %v755, %v754
  %v767 = vpack.c.b16 %v757, %v756
  %v768 = vpack.c.b16 %v759, %v758
  %v769 = vpack.c.b16 %v761, %v760
  %v771 = vsel %vm50, %v762, 0
  %v774 = vsel %vm50, %v763, 0
  %v777 = vsel %vm50, %v764, 0
  %v780 = vsel %vm50, %v765, 0
  %v783 = vsel %vm50, %v766, 0
  %v786 = vsel %vm50, %v767, 0
  %v789 = vsel %vm50, %v768, 0
  %v792 = vsel %vm50, %v769, 0
  %v795 = vsel %vm677, %v611, 0
  %797 = vmatpush.bf16.msra.mxu0 0
  %798 = vmatpush.bf16.msra.mxu0 0
  %799 = vmatpush.bf16.msra.mxu0 0
  %800 = vmatpush.bf16.msra.mxu0 0
  %801 = vmatpush.bf16.msra.mxu0 0
  %802 = vmatpush.bf16.msra.mxu0 0
  %803 = vmatpush.bf16.msra.mxu0 0
  %804 = vmatpush.bf16.msra.mxu0 %v795
  %805 = vmatmul.bf16.gmra.mxu0 %v771
  %v806 = vpop.f32.mrf.mxu0
  %v807 = vadd.f32 %v691, %v806
  %v808 = vpop.f32.mrf.mxu0
  %v809 = vadd.f32 %v693, %v808
  %810 = vmatmul.bf16.gmra.mxu0 %v774
  %v811 = vpop.f32.mrf.mxu0
  %v812 = vadd.f32 %v696, %v811
  %v813 = vpop.f32.mrf.mxu0
  %v814 = vadd.f32 %v698, %v813
  %815 = vmatmul.bf16.gmra.mxu0 %v777
  %v816 = vpop.f32.mrf.mxu0
  %v817 = vadd.f32 %v701, %v816
  %v818 = vpop.f32.mrf.mxu0
  %v819 = vadd.f32 %v703, %v818
  %820 = vmatmul.bf16.gmra.mxu0 %v780
  %v821 = vpop.f32.mrf.mxu0
  %v822 = vadd.f32 %v706, %v821
  %v823 = vpop.f32.mrf.mxu0
  %v824 = vadd.f32 %v708, %v823
  %825 = vmatmul.bf16.gmra.mxu0 %v783
  %v826 = vpop.f32.mrf.mxu0
  %v827 = vadd.f32 %v711, %v826
  %v828 = vpop.f32.mrf.mxu0
  %v829 = vadd.f32 %v713, %v828
  %830 = vmatmul.bf16.gmra.mxu0 %v786
  %v831 = vpop.f32.mrf.mxu0
  %v832 = vadd.f32 %v716, %v831
  %v833 = vpop.f32.mrf.mxu0
  %v834 = vadd.f32 %v718, %v833
  %835 = vmatmul.bf16.gmra.mxu0 %v789
  %v836 = vpop.f32.mrf.mxu0
  %v837 = vadd.f32 %v721, %v836
  %v838 = vpop.f32.mrf.mxu0
  %v839 = vadd.f32 %v723, %v838
  %840 = vmatmul.bf16.gmra.mxu0 %v792
  %v841 = vpop.f32.mrf.mxu0
  %v842 = vadd.f32 %v726, %v841
  %v843 = vpop.f32.mrf.mxu0
  %v844 = vadd.f32 %v728, %v843
  %845 = vdwg.mxu0
  %v846 = vld [vmem:[%s3] sm:$0x1]
  %v848 = vperm.slane %v846, 0
  %v850 = vadd.f32 %v807, %v848
  %v851 = vadd.f32 %v809, %v848
  %v852 = vadd.f32 %v812, %v848
  %v853 = vadd.f32 %v814, %v848
  %v854 = vadd.f32 %v817, %v848
  %v855 = vadd.f32 %v819, %v848
  %v856 = vadd.f32 %v822, %v848
  %v857 = vadd.f32 %v824, %v848
  %v858 = vadd.f32 %v827, %v848
  %v859 = vadd.f32 %v829, %v848
  %v860 = vadd.f32 %v832, %v848
  %v861 = vadd.f32 %v834, %v848
  %v862 = vadd.f32 %v837, %v848
  %v863 = vadd.f32 %v839, %v848
  %v864 = vadd.f32 %v842, %v848
  %v865 = vadd.f32 %v844, %v848
  %866 = vst.msk [vmem:[%s4] sm:$0xff] %vm50, %v850
  %867 = vst.msk [vmem:[%s4 + $0x8] sm:$0xff] %vm50, %v851
  %868 = vst.msk [vmem:[%s4 + $0x10] sm:$0xff] %vm50, %v852
  %869 = vst.msk [vmem:[%s4 + $0x18] sm:$0xff] %vm50, %v853
  %870 = vst.msk [vmem:[%s4 + $0x20] sm:$0xff] %vm50, %v854
  %871 = vst.msk [vmem:[%s4 + $0x28] sm:$0xff] %vm50, %v855
  %872 = vst.msk [vmem:[%s4 + $0x30] sm:$0xff] %vm50, %v856
  %873 = vst.msk [vmem:[%s4 + $0x38] sm:$0xff] %vm50, %v857
  %874 = vst.msk [vmem:[%s4 + $0x40] sm:$0xff] %vm50, %v858
  %875 = vst.msk [vmem:[%s4 + $0x48] sm:$0xff] %vm50, %v859
  %876 = vst.msk [vmem:[%s4 + $0x50] sm:$0xff] %vm50, %v860
  %877 = vst.msk [vmem:[%s4 + $0x58] sm:$0xff] %vm50, %v861
  %878 = vst.msk [vmem:[%s4 + $0x60] sm:$0xff] %vm50, %v862
  %879 = vst.msk [vmem:[%s4 + $0x68] sm:$0xff] %vm50, %v863
  %880 = vst.msk [vmem:[%s4 + $0x70] sm:$0xff] %vm50, %v864
  %881 = vst.msk [vmem:[%s4 + $0x78] sm:$0xff] %vm50, %v865
  // Predicated region
  $region18: #{tpu_custom_call.1} parent=0 // pred_check
    _
  $region19: #{tpu_custom_call.1} parent=0 // pred_check_branch
    %883 = sbr.rel (0) target = $region21
  $region20: #{tpu_custom_call.1} parent=0 // pred_region
    _
  $region21: #{tpu_custom_call.1} parent=0 // pred_fallthru
    _
  // Predicated region
  $region22: #{tpu_custom_call.1} parent=0 // pred_check
    _
  $region23: #{tpu_custom_call.1} parent=0 // pred_check_branch
    %885 = sbr.rel (0) target = $region25
  $region24: #{tpu_custom_call.1} parent=0 // pred_region
    _
  $region25: #{tpu_custom_call.1} parent=0 // pred_fallthru
    _

</llo_original>
